<compile_context>
chip_gen: v5e
topology: v5e:2x2
jax: 0.10.0
libtpu: 0.0.40
codegen_flags: <defaults>
</compile_context>

<pallas_src>
import functools

import jax
import jax.numpy as jnp
from jax import lax
from jax.experimental import pallas as pl
from jax.experimental.pallas import tpu as pltpu


_NUM_CORE_SPLITS = 2                        # leading "parallel" axis (dual-TC on v7x)
_BUFFER_BUDGET_BYTES = 20 * 1024 * 1024     # double-buffered input tiles
_VMEM_LIMIT_BYTES = 28 * 1024 * 1024        # scoped VMEM request
_CHUNK_TARGET_ELEMS = 32 * 1024             # rows-per-compute-chunk target (~32 vregs)


def _round_up(x, m):
    return ((x + m - 1) // m) * m


def _round_down(x, m):
    return (x // m) * m


def _policy_loss_kernel(rew_ref, logp_ref, out_ref, *, total_rows, n_inner, chunk):
    """Accumulate sum_rows(-logp * reward) into the resident (1, A) output block.

    rew_ref : (tm, R) rewards tile, R in {1, A}
    logp_ref: (tm, A) log-prob tile (source dtype)
    out_ref : (1, A)  f32 per-core partial sums (resident across the inner axis)
    """
    c = pl.program_id(0)            # core-split index ("parallel")
    i = pl.program_id(1)            # reduction step within this split ("arbitrary")
    tm = logp_ref.shape[0]
    n_chunks = tm // chunk

    tile = c * n_inner + i          # logical tile id (may overshoot; masked below)
    row0 = tile * tm                # first global row covered by this tile

    @pl.when(i == 0)
    def _init():
        out_ref[...] = jnp.zeros_like(out_ref)

    def accumulate(masked):
        @pl.loop(0, n_chunks)
        def _chunk_body(k):
            start = pl.multiple_of(k * chunk, chunk)
            lp = logp_ref[pl.ds(start, chunk), :].astype(jnp.float32)
            rw = rew_ref[pl.ds(start, chunk), :].astype(jnp.float32)
            prod = -lp * rw                      # (chunk, A); rewards broadcast if (chunk, 1)
            if masked:
                rid = lax.broadcasted_iota(jnp.int32, prod.shape, 0) + (row0 + start)
                prod = jnp.where(rid < total_rows, prod, 0.0)
            out_ref[...] += jnp.sum(prod, axis=0, keepdims=True)

    full_tile = row0 + tm <= total_rows

    @pl.when(full_tile)
    def _full():
        accumulate(masked=False)

    @pl.when(jnp.logical_not(full_tile))
    def _ragged():
        accumulate(masked=True)


def tracking_policy_loss(saved_log_probs, rewards, *, max_tile_rows=None):
    """saved_log_probs: [T, ...] or [T]; rewards: [T] (or length-1). Returns (1,) f32."""
    logp = jnp.asarray(saved_log_probs)
    rew = jnp.asarray(rewards)

    T = int(logp.shape[0])
    logp2 = logp.reshape(T, -1)                               # (T, A)
    A = int(logp2.shape[1])

    rew_flat = rew.astype(jnp.float32).reshape(-1)
    if int(rew_flat.shape[0]) != T:
        rew_flat = jnp.broadcast_to(rew_flat, (T,))           # e.g. single shared reward

    itemsize = jnp.dtype(logp2.dtype).itemsize
    native = {4: 8, 2: 16, 1: 32}.get(itemsize, 8)            # packed sublane granularity

    if A == 1:
        # Lane-dense path: fold the flat T-vectors into (rows, 128) lane-major
        # slabs.  Zero padding contributes exactly 0 to the sum.
        # TODO(synk): for huge 1-D inputs with T % (native*128) != 0 the pad
        # copies the flat vector once; a split main+tail call would avoid it.
        flat_lp = logp2.reshape(-1)
        grain = native * 128
        t_pad = _round_up(max(T, 1), grain)
        if t_pad != T:
            flat_lp = jnp.pad(flat_lp, (0, t_pad - T))
            rew_flat = jnp.pad(rew_flat, (0, t_pad - T))
        logp_arr = flat_lp.reshape(t_pad // 128, 128)
        rew_arr = rew_flat.reshape(t_pad // 128, 128)
    else:
        logp_arr = logp2
        rew_arr = rew_flat.reshape(T, 1)

    rows, a = (int(s) for s in logp_arr.shape)
    r = int(rew_arr.shape[1])

    # Tiny inputs: pad rows up to one native sublane group (cheap; zeros add 0).
    if rows < native:
        pad = native - rows
        logp_arr = jnp.pad(logp_arr, ((0, pad), (0, 0)))
        rew_arr = jnp.pad(rew_arr, ((0, pad), (0, 0)))
        rows += pad

    # --- tile-size selection -------------------------------------------------
    lane_bytes_lp = _round_up(a, 128) * itemsize              # VMEM row footprint (lane padded)
    lane_bytes_rw = _round_up(r, 128) * 4
    row_bytes = lane_bytes_lp + lane_bytes_rw

    cap = 16384 if max_tile_rows is None else max(
        native, _round_down(int(max_tile_rows), native))

    # Rows per compute chunk (bounds live vregs inside the kernel).
    chunk = _CHUNK_TARGET_ELEMS // _round_up(a, 128)
    chunk = max(native, min(512, _round_down(chunk, native)))
    chunk = min(chunk, _round_down(rows, native), cap)

    # Rows per DMA'd tile: as large as the double-buffered budget allows.
    tm = _BUFFER_BUDGET_BYTES // (2 * row_bytes)
    tm = max(chunk, _round_down(min(tm, cap), chunk))
    tm = min(tm, _round_down(rows, chunk))

    n_tiles = -(-rows // tm)
    n_inner = -(-n_tiles // _NUM_CORE_SPLITS)

    def _row_block(ci, ii):
        # Clamp the (at most one) overshoot tile of the 2-way split to a valid
        # block; its contribution is masked to zero in-kernel.
        t = jnp.minimum(ci * n_inner + ii, n_tiles - 1)
        return (t, 0)

    kernel = functools.partial(
        _policy_loss_kernel, total_rows=rows, n_inner=n_inner, chunk=chunk)

    partials = pl.pallas_call(
        kernel,
        out_shape=jax.ShapeDtypeStruct((_NUM_CORE_SPLITS, 1, a), jnp.float32),
        grid_spec=pltpu.PrefetchScalarGridSpec(
            num_scalar_prefetch=0,
            grid=(_NUM_CORE_SPLITS, n_inner),
            in_specs=[
                pl.BlockSpec((tm, r), _row_block),    # rewards tile
                pl.BlockSpec((tm, a), _row_block),    # log-prob tile (source dtype)
            ],
            out_specs=pl.BlockSpec((None, 1, a), lambda ci, ii: (ci, 0, 0)),
        ),
        compiler_params=pltpu.CompilerParams(
            dimension_semantics=("parallel", "arbitrary"),
            vmem_limit_bytes=_VMEM_LIMIT_BYTES,
        ),
    )(rew_arr, logp_arr)

    # Tiny final collapse (2 * A elements) in the wrapper; matches torch
    # .sum().unsqueeze(0) -> shape (1,).
    # TODO(synk): torch's .requires_grad_(True) / .cuda() (autograd flag +
    # device move) have no Pallas equivalent; only the forward value is computed.
    return jnp.sum(partials).reshape((1,))


def _reference(saved_log_probs, rewards):
    lp = jnp.asarray(saved_log_probs, dtype=jnp.float32)
    rw = jnp.asarray(rewards, dtype=jnp.float32)
    lp2 = lp.reshape(lp.shape[0], -1)
    return jnp.sum(-lp2 * rw.reshape(-1, 1)).reshape((1,))


if __name__ == "__main__":
    key = jax.random.PRNGKey(0)
    k1, k2, k3, k4, k5, k6, k7, k8 = jax.random.split(key, 8)

    # Case 1: per-step log-prob vectors, tile-friendly shape.
    T1, A1 = 16, 128
    lp1 = -jnp.abs(jax.random.normal(k1, (T1, A1), dtype=jnp.float32))
    rw1 = jax.random.normal(k2, (T1,), dtype=jnp.float32)
    out1 = jax.block_until_ready(tracking_policy_loss(lp1, rw1))
    ref1 = _reference(lp1, rw1)
    assert out1.shape == (1,)
    assert jnp.allclose(out1, ref1, rtol=1e-4, atol=1e-3), (out1, ref1)

    # Case 2: ragged T (in-kernel tail masking, no jnp.pad of the log-probs).
    T2, A2 = 12, 128
    lp2 = -jnp.abs(jax.random.normal(k3, (T2, A2), dtype=jnp.float32))
    rw2 = jax.random.normal(k4, (T2,), dtype=jnp.float32)
    out2 = jax.block_until_ready(tracking_policy_loss(lp2, rw2))
    ref2 = _reference(lp2, rw2)
    assert out2.shape == (1,)
    assert jnp.allclose(out2, ref2, rtol=1e-4, atol=1e-3), (out2, ref2)

    # Case 3: scalar log-probs (1-D input) -> lane-dense path.
    T3 = 300
    lp3 = -jnp.abs(jax.random.normal(k5, (T3,), dtype=jnp.float32))
    rw3 = jax.random.normal(k6, (T3,), dtype=jnp.float32)
    out3 = jax.block_until_ready(tracking_policy_loss(lp3, rw3))
    ref3 = _reference(lp3, rw3)
    assert out3.shape == (1,)
    assert jnp.allclose(out3, ref3, rtol=1e-4, atol=1e-3), (out3, ref3)

    # Case 4: multi-tile + dual-core split + overshoot clamp (forced small tiles).
    T4, A4 = 100, 128
    lp4 = -jnp.abs(jax.random.normal(k7, (T4, A4), dtype=jnp.float32))
    rw4 = jax.random.normal(k8, (T4,), dtype=jnp.float32)
    out4 = jax.block_until_ready(tracking_policy_loss(lp4, rw4, max_tile_rows=16))
    ref4 = _reference(lp4, rw4)
    assert out4.shape == (1,)
    assert jnp.allclose(out4, ref4, rtol=1e-4, atol=1e-3), (out4, ref4)

    print("KERNEL_OK")
</pallas_src>

<mosaic_0001>
module attributes {stable_mosaic.version = 11 : i64} {
  func.func @_policy_loss_kernel(%arg0: i32, %arg1: i32, %arg2: memref<16x1xf32, #tpu.memory_space<vmem>>, %arg3: memref<16x128xf32, #tpu.memory_space<vmem>>, %arg4: memref<1x1x128xf32, #tpu.memory_space<vmem>>) attributes {dimension_semantics = [#tpu.dimension_semantics<parallel>, #tpu.dimension_semantics<arbitrary>], iteration_bounds = array<i64: 2, 1>, scalar_prefetch = 0 : i64, scratch_operands = 0 : i64, tpu.core_type = #tpu.core_type<tc>, window_params = [{transform_indices = @transform_0, window_bounds = array<i64: 16, 1>}, {transform_indices = @transform_1, window_bounds = array<i64: 16, 128>}, {transform_indices = @transform_2, window_bounds = array<i64: 1, 1, 128>}]} {
    %c1_i32 = arith.constant 1 : i32
    %0 = arith.muli %arg0, %c1_i32 : i32
    %1 = arith.addi %0, %arg1 : i32
    %c16_i32 = arith.constant 16 : i32
    %2 = arith.muli %1, %c16_i32 : i32
    %c0_i32 = arith.constant 0 : i32
    %3 = arith.cmpi eq, %arg1, %c0_i32 : i32
    %4 = arith.extui %3 : i1 to i32
    %c0_i32_0 = arith.constant 0 : i32
    %5 = arith.cmpi ne, %4, %c0_i32_0 : i32
    scf.if %5 {
      %cst = arith.constant 0.000000e+00 : f32
      %13 = vector.broadcast %cst : f32 to vector<1x128xf32>
      %c0 = arith.constant 0 : index
      %c0_5 = arith.constant 0 : index
      %c0_6 = arith.constant 0 : index
      %14 = vector.load %arg4[%c0, %c0_5, %c0_6] : memref<1x1x128xf32, #tpu.memory_space<vmem>>, vector<1x1x128xf32>
      %15 = vector.shape_cast %14 : vector<1x1x128xf32> to vector<1x128xf32>
      %16 = vector.shape_cast %13 : vector<1x128xf32> to vector<1x1x128xf32>
      tpu.vector_store %arg4[%c0, %c0_5, %c0_6], %16 {strides = array<i32>} : memref<1x1x128xf32, #tpu.memory_space<vmem>>, vector<1x1x128xf32>,
    } else {
    }
    %c16_i32_1 = arith.constant 16 : i32
    %6 = arith.addi %2, %c16_i32_1 : i32
    %c16_i32_2 = arith.constant 16 : i32
    %7 = arith.cmpi sle, %6, %c16_i32_2 : i32
    %8 = arith.extui %7 : i1 to i32
    %c0_i32_3 = arith.constant 0 : i32
    %9 = arith.cmpi ne, %8, %c0_i32_3 : i32
    scf.if %9 {
      %c0_i32_5 = arith.constant 0 : i32
      %c1_i32_6 = arith.constant 1 : i32
      %13 = arith.muli %c0_i32_5, %c1_i32_6 : i32
      %c0_i32_7 = arith.constant 0 : i32
      %14 = arith.addi %c0_i32_7, %13 : i32
      %c16_i32_8 = arith.constant 16 : i32
      %15 = arith.muli %14, %c16_i32_8 : i32
      %16 = tpu.assume_multiple %15, 16 : i32
      %17 = arith.index_cast %16 : i32 to index
      %c0 = arith.constant 0 : index
      %18 = vector.load %arg3[%17, %c0] : memref<16x128xf32, #tpu.memory_space<vmem>>, vector<16x128xf32>
      %19 = arith.index_cast %16 : i32 to index
      %c0_9 = arith.constant 0 : index
      %20 = vector.load %arg2[%19, %c0_9] : memref<16x1xf32, #tpu.memory_space<vmem>>, vector<16x1xf32>
      %cst = arith.constant 0.000000e+00 : f32
      %21 = vector.broadcast %cst : f32 to vector<16x128xf32>
      %22 = arith.subf %21, %18 : vector<16x128xf32>
      %23 = vector.broadcast %20 : vector<16x1xf32> to vector<16x128xf32>
      %24 = arith.mulf %22, %23 : vector<16x128xf32>
      %c0_10 = arith.constant 0 : index
      %c0_11 = arith.constant 0 : index
      %c0_12 = arith.constant 0 : index
      %25 = vector.load %arg4[%c0_10, %c0_11, %c0_12] : memref<1x1x128xf32, #tpu.memory_space<vmem>>, vector<1x1x128xf32>
      %26 = vector.shape_cast %25 : vector<1x1x128xf32> to vector<1x128xf32>
      %cst_13 = arith.constant dense<0.000000e+00> : vector<128xf32>
      %27 = vector.multi_reduction <add>, %24, %cst_13 [0] : vector<16x128xf32> to vector<128xf32>
      %28 = vector.shape_cast %27 : vector<128xf32> to vector<1x128xf32>
      %29 = arith.addf %26, %28 : vector<1x128xf32>
      %c0_14 = arith.constant 0 : index
      %c0_15 = arith.constant 0 : index
      %c0_16 = arith.constant 0 : index
      %30 = vector.load %arg4[%c0_14, %c0_15, %c0_16] : memref<1x1x128xf32, #tpu.memory_space<vmem>>, vector<1x1x128xf32>
      %31 = vector.shape_cast %30 : vector<1x1x128xf32> to vector<1x128xf32>
      %32 = vector.shape_cast %29 : vector<1x128xf32> to vector<1x1x128xf32>
      tpu.vector_store %arg4[%c0_14, %c0_15, %c0_16], %32 {strides = array<i32>} : memref<1x1x128xf32, #tpu.memory_space<vmem>>, vector<1x1x128xf32>,
      %c1_i32_17 = arith.constant 1 : i32
    } else {
    }
    %true = arith.constant true
    %10 = arith.xori %7, %true : i1
    %11 = arith.extui %10 : i1 to i32
    %c0_i32_4 = arith.constant 0 : i32
    %12 = arith.cmpi ne, %11, %c0_i32_4 : i32
    scf.if %12 {
      %c0_i32_5 = arith.constant 0 : i32
      %c1_i32_6 = arith.constant 1 : i32
      %13 = arith.muli %c0_i32_5, %c1_i32_6 : i32
      %c0_i32_7 = arith.constant 0 : i32
      %14 = arith.addi %c0_i32_7, %13 : i32
      %c16_i32_8 = arith.constant 16 : i32
      %15 = arith.muli %14, %c16_i32_8 : i32
      %16 = tpu.assume_multiple %15, 16 : i32
      %17 = arith.index_cast %16 : i32 to index
      %c0 = arith.constant 0 : index
      %18 = vector.load %arg3[%17, %c0] : memref<16x128xf32, #tpu.memory_space<vmem>>, vector<16x128xf32>
      %19 = arith.index_cast %16 : i32 to index
      %c0_9 = arith.constant 0 : index
      %20 = vector.load %arg2[%19, %c0_9] : memref<16x1xf32, #tpu.memory_space<vmem>>, vector<16x1xf32>
      %cst = arith.constant 0.000000e+00 : f32
      %21 = vector.broadcast %cst : f32 to vector<16x128xf32>
      %22 = arith.subf %21, %18 : vector<16x128xf32>
      %23 = vector.broadcast %20 : vector<16x1xf32> to vector<16x128xf32>
      %24 = arith.mulf %22, %23 : vector<16x128xf32>
      %25 = tpu.iota {dimensions = array<i32: 0>} : vector<16x128xi32>
      %26 = arith.addi %2, %16 : i32
      %27 = vector.broadcast %26 : i32 to vector<16x128xi32>
      %28 = arith.addi %25, %27 : vector<16x128xi32>
      %c16_i32_10 = arith.constant 16 : i32
      %29 = vector.broadcast %c16_i32_10 : i32 to vector<16x128xi32>
      %30 = arith.cmpi slt, %28, %29 : vector<16x128xi32>
      %cst_11 = arith.constant 0.000000e+00 : f32
      %31 = vector.broadcast %cst_11 : f32 to vector<16x128xf32>
      %32 = arith.select %30, %24, %31 : vector<16x128xi1>, vector<16x128xf32>
      %c0_12 = arith.constant 0 : index
      %c0_13 = arith.constant 0 : index
      %c0_14 = arith.constant 0 : index
      %33 = vector.load %arg4[%c0_12, %c0_13, %c0_14] : memref<1x1x128xf32, #tpu.memory_space<vmem>>, vector<1x1x128xf32>
      %34 = vector.shape_cast %33 : vector<1x1x128xf32> to vector<1x128xf32>
      %cst_15 = arith.constant dense<0.000000e+00> : vector<128xf32>
      %35 = vector.multi_reduction <add>, %32, %cst_15 [0] : vector<16x128xf32> to vector<128xf32>
      %36 = vector.shape_cast %35 : vector<128xf32> to vector<1x128xf32>
      %37 = arith.addf %34, %36 : vector<1x128xf32>
      %c0_16 = arith.constant 0 : index
      %c0_17 = arith.constant 0 : index
      %c0_18 = arith.constant 0 : index
      %38 = vector.load %arg4[%c0_16, %c0_17, %c0_18] : memref<1x1x128xf32, #tpu.memory_space<vmem>>, vector<1x1x128xf32>
      %39 = vector.shape_cast %38 : vector<1x1x128xf32> to vector<1x128xf32>
      %40 = vector.shape_cast %37 : vector<1x128xf32> to vector<1x1x128xf32>
      tpu.vector_store %arg4[%c0_16, %c0_17, %c0_18], %40 {strides = array<i32>} : memref<1x1x128xf32, #tpu.memory_space<vmem>>, vector<1x1x128xf32>,
      %c1_i32_19 = arith.constant 1 : i32
    } else {
    }
    return
  }
  func.func @transform_0(%arg0: i32, %arg1: i32) -> (i32, i32) {
    %c1_i32 = arith.constant 1 : i32
    %0 = arith.muli %arg0, %c1_i32 : i32
    %1 = arith.addi %0, %arg1 : i32
    %c0_i32 = arith.constant 0 : i32
    %2 = arith.minsi %1, %c0_i32 : i32
    %c0_i32_0 = arith.constant 0 : i32
    %c0_i32_1 = arith.constant 0 : i32
    return %2, %c0_i32_0 : i32, i32
  }
  func.func @transform_1(%arg0: i32, %arg1: i32) -> (i32, i32) {
    %c1_i32 = arith.constant 1 : i32
    %0 = arith.muli %arg0, %c1_i32 : i32
    %1 = arith.addi %0, %arg1 : i32
    %c0_i32 = arith.constant 0 : i32
    %2 = arith.minsi %1, %c0_i32 : i32
    %c0_i32_0 = arith.constant 0 : i32
    %c0_i32_1 = arith.constant 0 : i32
    return %2, %c0_i32_0 : i32, i32
  }
  func.func @transform_2(%arg0: i32, %arg1: i32) -> (i32, i32, i32) {
    %c0_i32 = arith.constant 0 : i32
    %c0_i32_0 = arith.constant 0 : i32
    %c0_i32_1 = arith.constant 0 : i32
    return %arg0, %c0_i32, %c0_i32_0 : i32, i32, i32
  }
}

</mosaic_0001>

<llo_original>
// kernel: tpu_custom_call.1
$region0: #{tpu_custom_call.1}
  #allocation0 [shape = 'u32[]', space=smem, size = 0x4, offset = 0x4, fixed_abs, tag = 'smem constant byte address 0x4 - core index']
  #allocation1 [shape = 'u32[72,128]{1,0:T(1,128)}', space=vmem, size = 0x9000, scoped, tag = 'internal scratch']
  %s0 = inlined_call_operand.vmem [shape: f32[16,1], index: 0, kind: input, shape index: {}]
  %s1 = inlined_call_operand.vmem [shape: f32[16,128], index: 1, kind: input, shape index: {}]
  %s2 = inlined_call_operand.hbm [shape: f32[2,1,128], index: 2, kind: output, shape index: {}]
  %s3 = sld [smem:[#allocation0]]
  $region53: #{tpu_custom_call.1} parent=0
    _
  %s5 = ssub.s32 1, %s3
  %s6 = scalar_select 0, %s5, %s3
  $region1: #{tpu_custom_call.1} parent=0
    #allocation2 [shape = 'u8[1024]{0}', space=vmem, size = 0x400, scoped, tag = 'output window, operand 0']
    #allocation3 [shape = 's32[2]{0}', space=sflag, size = 0x8, scoped, tag = 'scoped memory for tpu_custom_call.1']
    %7 = vsyncpa [#allocation3], 0
    %s8 = scalar_lea.sflag [#allocation3], 1
    %9 = vsyncpa %s8, 0
    loop: start=0, step=1, limit=4
    $region2: #{tpu_custom_call.1} parent=1 // loop_pre_header
      _
    $region3: #{tpu_custom_call.1} parent=1 // loop_header
      %s11 = sphi 0, %s15
      %p12 = scmp.ge.s32.totalorder %s11, 4
      %s18 = sphi 0, %s30
      %s19 = sphi 0, %s26
      %s20 = sphi 0, %s18
      %s21 = sphi 0, %s19
      %s22 = sphi 0, %s20
      %s23 = sphi 0, %s21
      %s39 = sphi 0, %s41
      %s42 = sphi 0, %s39
      %s43 = sphi 0, %s42
      %s59 = sphi 0, %s43
      %s71 = sphi 0, %s73
      %s74 = sphi 0, %s71
      %s75 = sphi 0, %s74
      %s91 = sphi 0, %s75
      %s97 = sphi 0, %s99
      %s100 = sphi 0, %s97
      %s101 = sphi 0, %s100
      %s117 = sphi 0, %s101
    $region4: #{tpu_custom_call.1} parent=1 // loop_header_branch
      %14 = sbr.rel (%p12) target = $region8
    $region5: #{tpu_custom_call.1} parent=1 // loop_body
      %s16 = ssub.s32 %s11, 1
      %s17 = ssub.s32 %s11, 2
      %s24 = sadd.s32 1, %s19
      %p25 = scmp.ge.s32.totalorder %s24, 1
      %s26 = scalar_select %p25, 0, %s24
      %s27 = sadd.s32 1, %s18
      %s28 = scalar_select %p25, %s27, %s18
      %p29 = scmp.ge.s32.totalorder %s28, 2
      %s30 = scalar_select %p29, 0, %s28
      %s31 = sadd.s32 %s18, %s19
      %p32 = scmp.lt.s32.totalorder %s31, 0
      %s33 = scalar_select %p32, %s31, 0
      %s34 = sadd.s32 %s30, %s26
      %p35 = scmp.lt.s32.totalorder %s34, 0
      %s36 = scalar_select %p35, %s34, 0
      %s37 = ssub.s32 %s33, %s36
      %p38 = scmp.eq.s32.totalorder %s37, 0
      %s40 = sadd.s32 %s39, 1
      %s41 = scalar_select %p38, %s39, %s40
      %p44 = pneg %p38
      %p45 = scmp.eq.s32.totalorder %s11, 1
      %p46 = por %p44, %p45
      %p47 = scmp.ne.s32.totalorder %s39, %s42
      %p48 = scmp.eq.s32.totalorder %s11, 0
      %p49 = por %p47, %p48
      %p50 = scmp.ne.s32.totalorder %s39, %s42
      %p51 = scmp.eq.s32.totalorder %s16, 1
      %p52 = por %p50, %p51
      %p53 = scmp.ne.s32.totalorder %s42, %s43
      %p54 = scmp.eq.s32.totalorder %s16, 0
      %p55 = por %p53, %p54
      %p56 = scmp.ne.s32.totalorder %s42, %s43
      %p57 = scmp.eq.s32.totalorder %s17, 1
      %p58 = por %p56, %p57
      %p60 = scmp.ne.s32.totalorder %s43, %s59
      %p61 = scmp.eq.s32.totalorder %s17, 0
      %p62 = por %p60, %p61
      %s63 = sadd.s32 %s18, %s19
      %p64 = scmp.lt.s32.totalorder %s63, 0
      %s65 = scalar_select %p64, %s63, 0
      %s66 = sadd.s32 %s30, %s26
      %p67 = scmp.lt.s32.totalorder %s66, 0
      %s68 = scalar_select %p67, %s66, 0
      %s69 = ssub.s32 %s65, %s68
      %p70 = scmp.eq.s32.totalorder %s69, 0
      %s72 = sadd.s32 %s71, 1
      %s73 = scalar_select %p70, %s71, %s72
      %p76 = pneg %p70
      %p77 = scmp.eq.s32.totalorder %s11, 1
      %p78 = por %p76, %p77
      %p79 = scmp.ne.s32.totalorder %s71, %s74
      %p80 = scmp.eq.s32.totalorder %s11, 0
      %p81 = por %p79, %p80
      %p82 = scmp.ne.s32.totalorder %s71, %s74
      %p83 = scmp.eq.s32.totalorder %s16, 1
      %p84 = por %p82, %p83
      %p85 = scmp.ne.s32.totalorder %s74, %s75
      %p86 = scmp.eq.s32.totalorder %s16, 0
      %p87 = por %p85, %p86
      %p88 = scmp.ne.s32.totalorder %s74, %s75
      %p89 = scmp.eq.s32.totalorder %s17, 1
      %p90 = por %p88, %p89
      %p92 = scmp.ne.s32.totalorder %s75, %s91
      %p93 = scmp.eq.s32.totalorder %s17, 0
      %p94 = por %p92, %p93
      %s95 = ssub.s32 %s18, %s30
      %p96 = scmp.eq.s32.totalorder %s95, 0
      %s98 = sadd.s32 %s97, 1
      %s99 = scalar_select %p96, %s97, %s98
      %p102 = pneg %p96
      %p103 = scmp.eq.s32.totalorder %s11, 1
      %p104 = por %p102, %p103
      %p105 = scmp.ne.s32.totalorder %s97, %s100
      %p106 = scmp.eq.s32.totalorder %s11, 0
      %p107 = por %p105, %p106
      %p108 = scmp.ne.s32.totalorder %s97, %s100
      %p109 = scmp.eq.s32.totalorder %s16, 1
      %p110 = por %p108, %p109
      %p111 = scmp.ne.s32.totalorder %s100, %s101
      %p112 = scmp.eq.s32.totalorder %s16, 0
      %p113 = por %p111, %p112
      %p114 = scmp.ne.s32.totalorder %s100, %s101
      %p115 = scmp.eq.s32.totalorder %s17, 1
      %p116 = por %p114, %p115
      %p118 = scmp.ne.s32.totalorder %s101, %s117
      %p119 = scmp.eq.s32.totalorder %s17, 0
      %p120 = por %p118, %p119
      %p121 = scmp.le.s32.totalorder 1, %s11
      %p122 = scmp.lt.s32.totalorder %s11, 3
      %p123 = pnand %p121, %p122
      %p124 = pneg %p123
      // Predicated region
      $region9: #{tpu_custom_call.1} parent=5 // pred_check
        _
      $region10: #{tpu_custom_call.1} parent=5 // pred_check_branch
        %126 = sbr.rel (%p123) target = $region12
      $region11: #{tpu_custom_call.1} parent=5 // pred_region
        %s127 = ssub.s32 %s11, 1
      $region12: #{tpu_custom_call.1} parent=5 // pred_fallthru
        _
      %p128 = scmp.lt.s32.totalorder %s11, 2
      // Predicated region
      $region13: #{tpu_custom_call.1} parent=5 // pred_check
        %p129 = pneg %p128
      $region14: #{tpu_custom_call.1} parent=5 // pred_check_branch
        %131 = sbr.rel (%p129) target = $region16
      $region15: #{tpu_custom_call.1} parent=5 // pred_region
        // Predicated region
        $region17: #{tpu_custom_call.1} parent=15 // pred_check
          %p132 = pneg %p49
        $region18: #{tpu_custom_call.1} parent=15 // pred_check_branch
          %134 = sbr.rel (%p132) target = $region20
        $region19: #{tpu_custom_call.1} parent=15 // pred_region
          %s135 = sadd.s32 %s18, %s19
          %p136 = scmp.lt.s32.totalorder %s135, 0
          %s137 = scalar_select %p136, %s135, 0
          %s138 = smul.u32 2, %s137
          %p139 = scmp.lt.s32.totalorder %s138, 1
          %s140 = scalar_select %p139, %s138, 1
          %s141 = smul.addr %s140, 8
          %s142 = scalar_lea.vmem %s0, %s141
          %s143 = sadd.s32 %s18, %s19
          %p144 = scmp.lt.s32.totalorder %s143, 0
          %s145 = scalar_select %p144, %s143, 0
          %s146 = smul.u32 2, %s145
        $region20: #{tpu_custom_call.1} parent=15 // pred_fallthru
          _
        // Predicated region
        $region21: #{tpu_custom_call.1} parent=15 // pred_check
          %p147 = pneg %p81
        $region22: #{tpu_custom_call.1} parent=15 // pred_check_branch
          %149 = sbr.rel (%p147) target = $region24
        $region23: #{tpu_custom_call.1} parent=15 // pred_region
          %s150 = sadd.s32 %s18, %s19
          %p151 = scmp.lt.s32.totalorder %s150, 0
          %s152 = scalar_select %p151, %s150, 0
          %s153 = smul.u32 2, %s152
          %p154 = scmp.lt.s32.totalorder %s153, 1
          %s155 = scalar_select %p154, %s153, 1
          %s156 = smul.addr %s155, 8
          %s157 = scalar_lea.vmem %s1, %s156
          %s158 = sadd.s32 %s18, %s19
          %p159 = scmp.lt.s32.totalorder %s158, 0
          %s160 = scalar_select %p159, %s158, 0
          %s161 = smul.u32 2, %s160
        $region24: #{tpu_custom_call.1} parent=15 // pred_fallthru
          _
      $region16: #{tpu_custom_call.1} parent=5 // pred_fallthru
        _
      %p162 = scmp.le.s32.totalorder 1, %s11
      %p163 = scmp.lt.s32.totalorder %s11, 3
      %p164 = pnand %p162, %p163
      %p165 = pneg %p164
      // Predicated region
      $region25: #{tpu_custom_call.1} parent=5 // pred_check
        _
      $region26: #{tpu_custom_call.1} parent=5 // pred_check_branch
        %167 = sbr.rel (%p164) target = $region28
      $region27: #{tpu_custom_call.1} parent=5 // pred_region
        %s168 = ssub.s32 %s11, 1
        %s169 = sadd.s32 %s20, %s21
        %p170 = scmp.lt.s32.totalorder %s169, 0
        %s171 = scalar_select %p170, %s169, 0
        %s172 = smul.u32 2, %s171
        %p173 = scmp.lt.s32.totalorder %s172, 1
        %s174 = scalar_select %p173, %s172, 1
        %s175 = smul.addr %s174, 8
        %s176 = scalar_lea.vmem %s0, %s175
        %p177 = pneg %p55
        %p178 = pneg %p52
        %s179 = sadd.s32 %s20, %s21
        %p180 = scmp.lt.s32.totalorder %s179, 0
        %s181 = scalar_select %p180, %s179, 0
        %s182 = smul.u32 2, %s181
        %p183 = scmp.lt.s32.totalorder %s182, 1
        %s184 = scalar_select %p183, %s182, 1
        %s185 = smul.addr %s184, 8
        %s186 = scalar_lea.vmem %s1, %s185
        %p187 = pneg %p87
        %p188 = pneg %p84
        %p189 = pneg %p113
        %p190 = pneg %p110
        %s191 = sand.u32 %s100, 1
        %s192 = scalar_lea.sflag [#allocation3], %s191
        %s193 = sand.u32 %s100, 1
        %s194 = scalar_lea.vmem [#allocation2], %s193
        %s195 = sadd.s32 %s20, %s21
        %p196 = scmp.lt.s32.totalorder %s195, 0
        %s197 = scalar_select %p196, %s195, 0
        %s198 = smul.u32 2, %s197
        %p199 = scmp.lt.s32.totalorder %s198, 1
        %s200 = scalar_select %p199, %s198, 1
        %s201 = smul.addr %s200, 8
        %s202 = scalar_lea.vmem %s0, %s201
        %s203 = sadd.s32 %s20, %s21
        %p204 = scmp.lt.s32.totalorder %s203, 0
        %s205 = scalar_select %p204, %s203, 0
        %s206 = smul.u32 2, %s205
        %s207 = sadd.s32 %s20, %s21
        %p208 = scmp.lt.s32.totalorder %s207, 0
        %s209 = scalar_select %p208, %s207, 0
        %s210 = smul.u32 2, %s209
        %p211 = scmp.lt.s32.totalorder %s210, 1
        %s212 = scalar_select %p211, %s210, 1
        %s213 = smul.addr %s212, 8
        %s214 = scalar_lea.vmem %s1, %s213
        %s215 = sadd.s32 %s20, %s21
        %p216 = scmp.lt.s32.totalorder %s215, 0
        %s217 = scalar_select %p216, %s215, 0
        %s218 = smul.u32 2, %s217
        %s219 = sadd.s32 %s20, %s21
        %s220 = smul.u32 %s219, 16
        %p221 = scmp.eq.s32.totalorder %s21, 0
        // Predicated region
        $region29: #{tpu_custom_call.1} parent=27 // pred_check
          %p222 = pneg %p221
        $region30: #{tpu_custom_call.1} parent=27 // pred_check_branch
          %224 = sbr.rel (%p222) target = $region32
        $region31: #{tpu_custom_call.1} parent=27 // pred_region
          %225 = vst [vmem:[%s194] sm:$0x1] 0.0
        $region32: #{tpu_custom_call.1} parent=27 // pred_fallthru
          _
        %s226 = sadd.s32 %s220, 16
        %p227 = scmp.le.s32.totalorder %s226, 16
        // Predicated region
        $region33: #{tpu_custom_call.1} parent=27 // pred_check
          %p228 = pneg %p227
        $region34: #{tpu_custom_call.1} parent=27 // pred_check_branch
          %230 = sbr.rel (%p228) target = $region36
        $region35: #{tpu_custom_call.1} parent=27 // pred_region
          %v231 = vld [vmem:[%s214] sm:$0xff]
          %v232 = vld [vmem:[%s214 + $0x8] sm:$0xff]
          %v233 = vld [vmem:[%s202] sm:$0xff]
          %v234 = vld [vmem:[%s202 + $0x8] sm:$0xff]
          %v235 = vsub.f32 0.0, %v231
          %v236 = vsub.f32 0.0, %v232
          %238 = vset.pattern.permute.xlu0 0
          %239 = vperm.xlu0 %238, %v233
          %v240 = vpop.permute.xlu0 %239
          %243 = vset.pattern.permute.xlu0 0
          %244 = vperm.xlu0 %243, %v234
          %v245 = vpop.permute.xlu0 %244
          %v247 = vmul.f32 %v235, %v240
          %v248 = vmul.f32 %v236, %v245
          %v249 = vld [vmem:[%s194] sm:$0x1]
          %v250 = vadd.f32 %v247, %v248
          %v251 = vrot.slane %v250, 4
          %v252 = vadd.f32 %v250, %v251
          %v253 = vrot.slane %v252, 2
          %v254 = vadd.f32 %v252, %v253
          %v255 = vrot.slane %v254, 1
          %v256 = vadd.f32 %v254, %v255
          %v257 = vadd.f32 %v249, %v256
          %258 = vst [vmem:[%s194] sm:$0x1] %v257
        $region36: #{tpu_custom_call.1} parent=27 // pred_fallthru
          _
        %p259 = scmp.gt.s32.totalorder %s226, 16
        // Predicated region
        $region37: #{tpu_custom_call.1} parent=27 // pred_check
          %p260 = pneg %p259
        $region38: #{tpu_custom_call.1} parent=27 // pred_check_branch
          %262 = sbr.rel (%p260) target = $region40
        $region39: #{tpu_custom_call.1} parent=27 // pred_region
          %v263 = vld [vmem:[%s214] sm:$0xff]
          %v264 = vld [vmem:[%s214 + $0x8] sm:$0xff]
          %v265 = vld [vmem:[%s202] sm:$0xff]
          %v266 = vld [vmem:[%s202 + $0x8] sm:$0xff]
          %v267 = vsub.f32 0.0, %v263
          %v268 = vsub.f32 0.0, %v264
          %270 = vset.pattern.permute.xlu0 0
          %271 = vperm.xlu0 %270, %v265
          %v272 = vpop.permute.xlu0 %271
          %275 = vset.pattern.permute.xlu0 0
          %276 = vperm.xlu0 %275, %v266
          %v277 = vpop.permute.xlu0 %276
          %v279 = vmul.f32 %v267, %v272
          %v280 = vmul.f32 %v268, %v277
          %v281 = vlaneseq
          %v282 = vshrl.u32 %v281, 7
          %v283 = vadd.s32 %v282, 8
          %s284 = sadd.s32 %s220, 0
          %v285 = vstv %s284
          %v286 = vadd.s32 %v282, %v285
          %v287 = vadd.s32 %v283, %v285
          %vm288 = vcmp.lt.s32.totalorder %v286, 16
          %vm289 = vcmp.lt.s32.totalorder %v287, 16
          %v290 = vsel %vm288, %v279, 0.0
          %v291 = vsel %vm289, %v280, 0.0
          %v292 = vld [vmem:[%s194] sm:$0x1]
          %v293 = vadd.f32 %v290, %v291
          %v294 = vrot.slane %v293, 4
          %v295 = vadd.f32 %v293, %v294
          %v296 = vrot.slane %v295, 2
          %v297 = vadd.f32 %v295, %v296
          %v298 = vrot.slane %v297, 1
          %v299 = vadd.f32 %v297, %v298
          %v300 = vadd.f32 %v292, %v299
          %301 = vst [vmem:[%s194] sm:$0x1] %v300
        $region40: #{tpu_custom_call.1} parent=27 // pred_fallthru
          _
        %s302 = sand.u32 %s100, 1
        %s303 = scalar_lea.sflag [#allocation3], %s302
        %s304 = sand.u32 %s100, 1
        %s305 = scalar_lea.vmem [#allocation2], %s304
        // Predicated region
        $region41: #{tpu_custom_call.1} parent=27 // pred_check
          %p306 = pneg %p110
        $region42: #{tpu_custom_call.1} parent=27 // pred_check_branch
          %308 = sbr.rel (%p306) target = $region44
        $region43: #{tpu_custom_call.1} parent=27 // pred_region
          %310 = vsyncadd %s303, 0
          %s311 = scalar_lea.hbm %s2, %s20
          %s313 = sshll.u32 %s305, 4
          %s314 = int_to_ptr.vmem [resolvable:$true] %s313
          %s315 = sshll.u32 %s311, 4
          %s316 = int_to_ptr.hbm [resolvable:$true] %s315
          %318 = dma.vmem_to_hbm [thread:$0]  %s314, 16, %s316, %s303
        $region44: #{tpu_custom_call.1} parent=27 // pred_fallthru
          _
      $region28: #{tpu_custom_call.1} parent=5 // pred_fallthru
        _
      %p319 = scmp.le.s32.totalorder 2, %s11
      // Predicated region
      $region45: #{tpu_custom_call.1} parent=5 // pred_check
        %p320 = pneg %p319
      $region46: #{tpu_custom_call.1} parent=5 // pred_check_branch
        %322 = sbr.rel (%p320) target = $region48
      $region47: #{tpu_custom_call.1} parent=5 // pred_region
        %s323 = ssub.s32 %s11, 2
        // Predicated region
        $region49: #{tpu_custom_call.1} parent=47 // pred_check
          %p324 = pneg %p116
        $region50: #{tpu_custom_call.1} parent=47 // pred_check_branch
          %326 = sbr.rel (%p324) target = $region52
        $region51: #{tpu_custom_call.1} parent=47 // pred_region
          %s327 = sand.u32 %s101, 1
          %s328 = scalar_lea.sflag [#allocation3], %s327
          %s329 = sand.u32 %s101, 1
          %s330 = scalar_lea.vmem [#allocation2], %s329
          %332 = dma.done %s328, 16
        $region52: #{tpu_custom_call.1} parent=47 // pred_fallthru
          _
      $region48: #{tpu_custom_call.1} parent=5 // pred_fallthru
        _
    $region6: #{tpu_custom_call.1} parent=1 // loop_footer
      %s15 = sadd.s32 1, %s11
    $region7: #{tpu_custom_call.1} parent=1 // loop_footer_branch
      %10 = sbr.rel target = $region3
    $region8: #{tpu_custom_call.1} parent=1 // loop_exit
      _
    %333 = vsyncpa [#allocation3], 1
    %s334 = scalar_lea.sflag [#allocation3], 1
    %335 = vsyncpa %s334, 1

</llo_original>
